<compile_context>
chip_gen: v6e
topology: v6e:2x2x1
jax: 0.10.0
libtpu: 0.0.40
codegen_flags: <defaults>
</compile_context>

<pallas_src>
import jax
import jax.numpy as jnp
from jax import lax
from jax.experimental import pallas as pl
from jax.experimental.pallas import tpu as pltpu


def _round_up(v, m):
    return (v + m - 1) // m * m


def nand_kernel(x_ref, w_ref, o_ref, acc_ref):
    """One fused matmul per K-step into a (tm, 2*Yp) accumulator, NAND at the end.

    x_ref:   (tm, tk)        activations tile
    w_ref:   (tk, 2*Yp)      packed [wa_t | wb_t] weights tile
    o_ref:   (tm, Yp)        lane-dense output tile
    acc_ref: (tm, 2*Yp) f32  VMEM accumulator (persists across the K grid axis)
    """
    k = pl.program_id(1)

    @pl.when(k == 0)
    def _init():
        acc_ref[...] = jnp.zeros_like(acc_ref)

    # Single MXU call covering both selectors (2*Yp wide).
    acc_ref[...] += jnp.dot(x_ref[...], w_ref[...],
                            preferred_element_type=jnp.float32)

    @pl.when(k == pl.num_programs(1) - 1)
    def _finalize():
        yp = o_ref.shape[-1]          # static, multiple of 128 -> lane-aligned split
        a = acc_ref[:, :yp]
        b = acc_ref[:, yp:]
        o_ref[...] = (1.0 - a * b).astype(o_ref.dtype)


def compacted_nand_forward(x, masked_a, masked_b):
    """x: (B, X) float32; masked_a / masked_b: (Y, X) forward-value (≈one-hot) masks."""
    B, X = x.shape
    Y = masked_a.shape[0]

    # --- tile sizes / padded shapes (all (8,128)-aligned) ---------------------
    tm = 256 if B > 256 else _round_up(B, 8)       # batch tile
    tk = 512 if X > 512 else _round_up(X, 128)     # contraction tile
    Bp = _round_up(B, tm)
    Xp = _round_up(X, tk)
    Yp = _round_up(Y, 128)                         # lane-dense output width

    # --- one-time weight prep (glue, outside the kernel hot path) ------------
    # Transpose + zero-pad + pack both selectors into a single (Xp, 2*Yp)
    # operand so the kernel issues one matmul instead of two.
    wa_t = jnp.zeros((Xp, Yp), x.dtype).at[:X, :Y].set(masked_a.T)
    wb_t = jnp.zeros((Xp, Yp), x.dtype).at[:X, :Y].set(masked_b.T)
    w_packed = jnp.concatenate([wa_t, wb_t], axis=1)        # (Xp, 2*Yp)

    xp = jnp.zeros((Bp, Xp), x.dtype).at[:B, :X].set(x)     # (Bp, Xp)

    grid = (Bp // tm, Xp // tk)

    out = pl.pallas_call(
        nand_kernel,
        out_shape=jax.ShapeDtypeStruct((Bp, Yp), jnp.float32),
        grid_spec=pltpu.PrefetchScalarGridSpec(
            num_scalar_prefetch=0,
            grid=grid,
            in_specs=[
                pl.BlockSpec((tm, tk), lambda i, k: (i, k)),       # x tile
                pl.BlockSpec((tk, 2 * Yp), lambda i, k: (k, 0)),   # packed weights
            ],
            out_specs=pl.BlockSpec((tm, Yp), lambda i, k: (i, 0)),
            scratch_shapes=[pltpu.VMEM((tm, 2 * Yp), jnp.float32)],
        ),
        compiler_params=pltpu.CompilerParams(
            dimension_semantics=("parallel", "arbitrary")),
    )(xp, w_packed)

    return out[:B, :Y]


def xavier_uniform(key, out_features, in_features):
    bound = jnp.sqrt(6.0 / (in_features + out_features))
    return jax.random.uniform(
        key, (out_features, in_features), jnp.float32, -bound, bound
    )


def weighted_random(key, selector, temperature=1.0):
    """JAX equivalent of the torch weighted_random (forward value)."""
    logits = selector / temperature                       # (Y, X)
    idx = jax.random.categorical(key, logits, axis=1)     # (Y,)  ~ multinomial(softmax)
    one_hot = jax.nn.one_hot(idx, selector.shape[1], dtype=selector.dtype)
    # straight-through trick; forward value == one_hot (same float ops as torch)
    return one_hot - lax.stop_gradient(selector) + selector


if __name__ == "__main__":
    key = jax.random.PRNGKey(0)
    k_x, k_wa, k_wb, k_sa, k_sb = jax.random.split(key, 5)

    # small shapes consistent with the module: Linear(in_features=32, out_features=16)
    B, X, Y = 8, 32, 16

    x = jax.random.normal(k_x, (B, X), jnp.float32)

    # deterministic parameter init (xavier_uniform, as in the module's __init__)
    wa = xavier_uniform(k_wa, Y, X)   # selector a: (Y, X)
    wb = xavier_uniform(k_wb, Y, X)   # selector b: (Y, X)

    masked_a = weighted_random(k_sa, wa)
    masked_b = weighted_random(k_sb, wb)

    out = compacted_nand_forward(x, masked_a, masked_b)
    jax.block_until_ready(out)

    # reference check in plain JAX
    ref = 1.0 - (x @ masked_a.T) * (x @ masked_b.T)
    assert out.shape == (B, Y)
    assert jnp.allclose(out, ref, atol=1e-5, rtol=1e-5)

    print("KERNEL_OK")
</pallas_src>

<mosaic_0001>
module attributes {stable_mosaic.version = 11 : i64} {
  func.func @nand_kernel(%arg0: i32, %arg1: i32, %arg2: memref<8x128xf32, #tpu.memory_space<vmem>>, %arg3: memref<128x256xf32, #tpu.memory_space<vmem>>, %arg4: memref<8x128xf32, #tpu.memory_space<vmem>>, %arg5: memref<8x256xf32, #tpu.memory_space<vmem>>) attributes {dimension_semantics = [#tpu.dimension_semantics<parallel>, #tpu.dimension_semantics<arbitrary>], iteration_bounds = array<i64: 1, 1>, scalar_prefetch = 0 : i64, scratch_operands = 1 : i64, tpu.core_type = #tpu.core_type<tc>, window_params = [{transform_indices = @transform_0, window_bounds = array<i64: 8, 128>}, {transform_indices = @transform_1, window_bounds = array<i64: 128, 256>}, {transform_indices = @transform_2, window_bounds = array<i64: 8, 128>}]} {
    %c0_i32 = arith.constant 0 : i32
    %0 = arith.cmpi eq, %arg1, %c0_i32 : i32
    %1 = arith.extui %0 : i1 to i32
    %c0_i32_0 = arith.constant 0 : i32
    %2 = arith.cmpi ne, %1, %c0_i32_0 : i32
    scf.if %2 {
      %cst_10 = arith.constant 0.000000e+00 : f32
      %12 = vector.broadcast %cst_10 : f32 to vector<8x256xf32>
      %c0_11 = arith.constant 0 : index
      %c0_12 = arith.constant 0 : index
      %13 = vector.load %arg5[%c0_11, %c0_12] : memref<8x256xf32, #tpu.memory_space<vmem>>, vector<8x256xf32>
      tpu.vector_store %arg5[%c0_11, %c0_12], %12 {strides = array<i32>} : memref<8x256xf32, #tpu.memory_space<vmem>>, vector<8x256xf32>,
    } else {
    }
    %c0 = arith.constant 0 : index
    %c0_1 = arith.constant 0 : index
    %3 = vector.load %arg5[%c0, %c0_1] : memref<8x256xf32, #tpu.memory_space<vmem>>, vector<8x256xf32>
    %c0_2 = arith.constant 0 : index
    %c0_3 = arith.constant 0 : index
    %4 = vector.load %arg2[%c0_2, %c0_3] : memref<8x128xf32, #tpu.memory_space<vmem>>, vector<8x128xf32>
    %c0_4 = arith.constant 0 : index
    %c0_5 = arith.constant 0 : index
    %5 = vector.load %arg3[%c0_4, %c0_5] : memref<128x256xf32, #tpu.memory_space<vmem>>, vector<128x256xf32>
    %cst = arith.constant dense<0.000000e+00> : vector<8x256xf32>
    %6 = tpu.matmul %4, %5, %cst {dimension_numbers = #tpu.dot_dimension_numbers<[1], [0], [0], [1], [0, 0, 1, 1], [], []>} : vector<8x128xf32>, vector<128x256xf32>, vector<8x256xf32> -> vector<8x256xf32>
    %7 = arith.addf %3, %6 : vector<8x256xf32>
    %c0_6 = arith.constant 0 : index
    %c0_7 = arith.constant 0 : index
    %8 = vector.load %arg5[%c0_6, %c0_7] : memref<8x256xf32, #tpu.memory_space<vmem>>, vector<8x256xf32>
    tpu.vector_store %arg5[%c0_6, %c0_7], %7 {strides = array<i32>} : memref<8x256xf32, #tpu.memory_space<vmem>>, vector<8x256xf32>,
    %c0_i32_8 = arith.constant 0 : i32
    %9 = arith.cmpi eq, %arg1, %c0_i32_8 : i32
    %10 = arith.extui %9 : i1 to i32
    %c0_i32_9 = arith.constant 0 : i32
    %11 = arith.cmpi ne, %10, %c0_i32_9 : i32
    scf.if %11 {
      %c0_10 = arith.constant 0 : index
      %c0_11 = arith.constant 0 : index
      %12 = vector.load %arg5[%c0_10, %c0_11] : memref<8x256xf32, #tpu.memory_space<vmem>>, vector<8x128xf32>
      %c0_12 = arith.constant 0 : index
      %c128 = arith.constant 128 : index
      %13 = vector.load %arg5[%c0_12, %c128] : memref<8x256xf32, #tpu.memory_space<vmem>>, vector<8x128xf32>
      %14 = arith.mulf %12, %13 : vector<8x128xf32>
      %cst_13 = arith.constant 1.000000e+00 : f32
      %15 = vector.broadcast %cst_13 : f32 to vector<8x128xf32>
      %16 = arith.subf %15, %14 : vector<8x128xf32>
      %c0_14 = arith.constant 0 : index
      %c0_15 = arith.constant 0 : index
      %17 = vector.load %arg4[%c0_14, %c0_15] : memref<8x128xf32, #tpu.memory_space<vmem>>, vector<8x128xf32>
      tpu.vector_store %arg4[%c0_14, %c0_15], %16 {strides = array<i32>} : memref<8x128xf32, #tpu.memory_space<vmem>>, vector<8x128xf32>,
    } else {
    }
    return
  }
  func.func @transform_0(%arg0: i32, %arg1: i32) -> (i32, i32) {
    %c0_i32 = arith.constant 0 : i32
    return %arg0, %arg1 : i32, i32
  }
  func.func @transform_1(%arg0: i32, %arg1: i32) -> (i32, i32) {
    %c0_i32 = arith.constant 0 : i32
    %c0_i32_0 = arith.constant 0 : i32
    return %arg1, %c0_i32 : i32, i32
  }
  func.func @transform_2(%arg0: i32, %arg1: i32) -> (i32, i32) {
    %c0_i32 = arith.constant 0 : i32
    %c0_i32_0 = arith.constant 0 : i32
    return %arg0, %c0_i32 : i32, i32
  }
}

</mosaic_0001>

<llo_original>
// kernel: tpu_custom_call.1
$region0: #{tpu_custom_call.1}
  #allocation0 [shape = 'u32[]', space=smem, size = 0x4, offset = 0x4, fixed_abs, tag = 'smem constant byte address 0x4 - core index']
  #allocation1 [shape = 'u32[144,128]{1,0:T(1,128)}', space=vmem, size = 0x12000, scoped, tag = 'internal scratch']
  #allocation2 [shape = 'f32[8,256]{1,0:T(8,128)}', space=vmem, size = 0x2000, scoped, tag = 'scratch operand']
  %s0 = inlined_call_operand.hbm [shape: f32[8,128], index: 0, kind: input, shape index: {}]
  %s1 = inlined_call_operand.hbm [shape: f32[128,256], index: 1, kind: input, shape index: {}]
  %s2 = inlined_call_operand.hbm [shape: f32[8,128], index: 2, kind: output, shape index: {}]
  %s3 = sld [smem:[#allocation0]]
  $region34: #{tpu_custom_call.1} parent=0
    _
  %s5 = ssub.s32 1, %s3
  %s6 = scalar_select 0, %s5, %s3
  $region1: #{tpu_custom_call.1} parent=0
    #allocation3 [shape = 'u8[4096]{0}', space=vmem, size = 0x1000, scoped, tag = 'input window, operand 0, single buffered']
    #allocation4 [shape = 's32[1]{0}', space=sflag, size = 0x4, scoped, tag = 'scoped memory for tpu_custom_call.1']
    #allocation5 [shape = 's32[1]{0}', space=sflag, size = 0x4, scoped, tag = 'scoped memory for tpu_custom_call.1']
    #allocation6 [shape = 'u8[131072]{0}', space=vmem, size = 0x20000, scoped, tag = 'input window, operand 1, single buffered']
    #allocation7 [shape = 's32[1]{0}', space=sflag, size = 0x4, scoped, tag = 'scoped memory for tpu_custom_call.1']
    #allocation8 [shape = 'u8[4096]{0}', space=vmem, size = 0x1000, scoped, tag = 'output window, operand 0, single buffered']
    %7 = vsyncpa [#allocation4], 0
    %8 = vsyncpa [#allocation7], 0
    %9 = vsyncpa [#allocation5], 0
    // Predicated region
    $region2: #{tpu_custom_call.1} parent=1 // pred_check
      _
    $region3: #{tpu_custom_call.1} parent=1 // pred_check_branch
      %11 = sbr.rel (0) target = $region5
    $region4: #{tpu_custom_call.1} parent=1 // pred_region
      %s13 = ssub.s32 128, 128
      %14 = vsyncadd [#allocation4], %s13
      %s16 = sshll.u32 [#allocation3], 4
      %s17 = int_to_ptr.vmem [resolvable:$true] %s16
      %19 = dma.hbm_to_vmem [thread:$0]  %s0, 128, %s17, [#allocation4]
    $region5: #{tpu_custom_call.1} parent=1 // pred_fallthru
      _
    // Predicated region
    $region6: #{tpu_custom_call.1} parent=1 // pred_check
      _
    $region7: #{tpu_custom_call.1} parent=1 // pred_check_branch
      %21 = sbr.rel (0) target = $region9
    $region8: #{tpu_custom_call.1} parent=1 // pred_region
      %s23 = ssub.s32 4096, 4096
      %24 = vsyncadd [#allocation7], %s23
      %s25 = sshll.u32 [#allocation6], 4
      %s26 = int_to_ptr.vmem [resolvable:$true] %s25
      %31 = dma.hbm_to_vmem [thread:$0]  %s1, 4096, %s26, [#allocation7], 256, 256, 16
    $region9: #{tpu_custom_call.1} parent=1 // pred_fallthru
      _
    // Predicated region
    $region10: #{tpu_custom_call.1} parent=1 // pred_check
      _
    $region11: #{tpu_custom_call.1} parent=1 // pred_check_branch
      %33 = sbr.rel (0) target = $region13
    $region12: #{tpu_custom_call.1} parent=1 // pred_region
      %34 = dma.done [#allocation4], 128
    $region13: #{tpu_custom_call.1} parent=1 // pred_fallthru
      _
    // Predicated region
    $region14: #{tpu_custom_call.1} parent=1 // pred_check
      _
    $region15: #{tpu_custom_call.1} parent=1 // pred_check_branch
      %36 = sbr.rel (0) target = $region17
    $region16: #{tpu_custom_call.1} parent=1 // pred_region
      %37 = dma.done [#allocation7], 4096
    $region17: #{tpu_custom_call.1} parent=1 // pred_fallthru
      _
    %p38 = scmp.eq.s32.totalorder 0, 0
    // Predicated region
    $region18: #{tpu_custom_call.1} parent=1 // pred_check
      %p39 = pneg %p38
    $region19: #{tpu_custom_call.1} parent=1 // pred_check_branch
      %41 = sbr.rel (%p39) target = $region21
    $region20: #{tpu_custom_call.1} parent=1 // pred_region
      %42 = vst [vmem:[#allocation2] sm:$0xff] 0.0
      %43 = vst [vmem:[#allocation2 + $0x8] sm:$0xff] 0.0
    $region21: #{tpu_custom_call.1} parent=1 // pred_fallthru
      _
    %v44 = vld [vmem:[#allocation2] sm:$0xff]
    %v45 = vld [vmem:[#allocation2 + $0x8] sm:$0xff]
    %v46 = vld [vmem:[#allocation3] sm:$0xff]
    %v47 = vld [vmem:[#allocation6] sm:$0xff]
    %v48 = vld [vmem:[#allocation6 + $0x8] sm:$0xff]
    %v49 = vld [vmem:[#allocation6 + $0x10] sm:$0xff]
    %v50 = vld [vmem:[#allocation6 + $0x18] sm:$0xff]
    %v51 = vld [vmem:[#allocation6 + $0x20] sm:$0xff]
    %v52 = vld [vmem:[#allocation6 + $0x28] sm:$0xff]
    %v53 = vld [vmem:[#allocation6 + $0x30] sm:$0xff]
    %v54 = vld [vmem:[#allocation6 + $0x38] sm:$0xff]
    %v55 = vld [vmem:[#allocation6 + $0x40] sm:$0xff]
    %v56 = vld [vmem:[#allocation6 + $0x48] sm:$0xff]
    %v57 = vld [vmem:[#allocation6 + $0x50] sm:$0xff]
    %v58 = vld [vmem:[#allocation6 + $0x58] sm:$0xff]
    %v59 = vld [vmem:[#allocation6 + $0x60] sm:$0xff]
    %v60 = vld [vmem:[#allocation6 + $0x68] sm:$0xff]
    %v61 = vld [vmem:[#allocation6 + $0x70] sm:$0xff]
    %v62 = vld [vmem:[#allocation6 + $0x78] sm:$0xff]
    %v63 = vld [vmem:[#allocation6 + $0x80] sm:$0xff]
    %v64 = vld [vmem:[#allocation6 + $0x88] sm:$0xff]
    %v65 = vld [vmem:[#allocation6 + $0x90] sm:$0xff]
    %v66 = vld [vmem:[#allocation6 + $0x98] sm:$0xff]
    %v67 = vld [vmem:[#allocation6 + $0xa0] sm:$0xff]
    %v68 = vld [vmem:[#allocation6 + $0xa8] sm:$0xff]
    %v69 = vld [vmem:[#allocation6 + $0xb0] sm:$0xff]
    %v70 = vld [vmem:[#allocation6 + $0xb8] sm:$0xff]
    %v71 = vld [vmem:[#allocation6 + $0xc0] sm:$0xff]
    %v72 = vld [vmem:[#allocation6 + $0xc8] sm:$0xff]
    %v73 = vld [vmem:[#allocation6 + $0xd0] sm:$0xff]
    %v74 = vld [vmem:[#allocation6 + $0xd8] sm:$0xff]
    %v75 = vld [vmem:[#allocation6 + $0xe0] sm:$0xff]
    %v76 = vld [vmem:[#allocation6 + $0xe8] sm:$0xff]
    %v77 = vld [vmem:[#allocation6 + $0xf0] sm:$0xff]
    %v78 = vld [vmem:[#allocation6 + $0xf8] sm:$0xff]
    %79 = vmatprep.subr.mxu0 %v78
    %80 = vmatpush1.msra.mxu0 %v77
    %81 = vmatprep.subr.mxu0 %v76
    %82 = vmatpush1.msra.mxu0 %v75
    %83 = vmatprep.subr.mxu0 %v74
    %84 = vmatpush1.msra.mxu0 %v73
    %85 = vmatprep.subr.mxu0 %v72
    %86 = vmatpush1.msra.mxu0 %v71
    %87 = vmatprep.subr.mxu0 %v70
    %88 = vmatpush1.msra.mxu0 %v69
    %89 = vmatprep.subr.mxu0 %v68
    %90 = vmatpush1.msra.mxu0 %v67
    %91 = vmatprep.subr.mxu0 %v66
    %92 = vmatpush1.msra.mxu0 %v65
    %93 = vmatprep.subr.mxu0 %v64
    %94 = vmatpush1.msra.mxu0 %v63
    %95 = vmatprep.subr.mxu0 %v62
    %96 = vmatpush1.msra.mxu0 %v61
    %97 = vmatprep.subr.mxu0 %v60
    %98 = vmatpush1.msra.mxu0 %v59
    %99 = vmatprep.subr.mxu0 %v58
    %100 = vmatpush1.msra.mxu0 %v57
    %101 = vmatprep.subr.mxu0 %v56
    %102 = vmatpush1.msra.mxu0 %v55
    %103 = vmatprep.subr.mxu0 %v54
    %104 = vmatpush1.msra.mxu0 %v53
    %105 = vmatprep.subr.mxu0 %v52
    %106 = vmatpush1.msra.mxu0 %v51
    %107 = vmatprep.subr.mxu0 %v50
    %108 = vmatpush1.msra.mxu0 %v49
    %109 = vmatprep.subr.mxu0 %v48
    %110 = vmatpush1.msra.mxu0 %v47
    %111 = vmatprep.subr.mxu0 0.0
    %112 = vmatpush2.msra.mxu0 0.0
    %113 = vmatprep.subr.mxu0 0.0
    %114 = vmatpush2.msra.mxu0 0.0
    %115 = vmatprep.subr.mxu0 0.0
    %116 = vmatpush2.msra.mxu0 0.0
    %117 = vmatprep.subr.mxu0 0.0
    %118 = vmatpush2.msra.mxu0 0.0
    %119 = vmatprep.subr.mxu0 0.0
    %120 = vmatpush2.msra.mxu0 0.0
    %121 = vmatprep.subr.mxu0 0.0
    %122 = vmatpush2.msra.mxu0 0.0
    %123 = vmatprep.subr.mxu0 0.0
    %124 = vmatpush2.msra.mxu0 0.0
    %125 = vmatprep.subr.mxu0 0.0
    %126 = vmatpush2.msra.mxu0 0.0
    %127 = vmatprep.subr.mxu0 0.0
    %128 = vmatpush2.msra.mxu0 0.0
    %129 = vmatprep.subr.mxu0 0.0
    %130 = vmatpush2.msra.mxu0 0.0
    %131 = vmatprep.subr.mxu0 0.0
    %132 = vmatpush2.msra.mxu0 0.0
    %133 = vmatprep.subr.mxu0 0.0
    %134 = vmatpush2.msra.mxu0 0.0
    %135 = vmatprep.subr.mxu0 0.0
    %136 = vmatpush2.msra.mxu0 0.0
    %137 = vmatprep.subr.mxu0 0.0
    %138 = vmatpush2.msra.mxu0 0.0
    %139 = vmatprep.subr.mxu0 0.0
    %140 = vmatpush2.msra.mxu0 0.0
    %141 = vmatprep.subr.mxu0 0.0
    %142 = vmatpush2.msra.mxu0 0.0
    %143 = vmatprep.mubr.f32.mxu0 0.0
    %144 = vmatmul.mubr.f32.gmra.mxu0 %v46
    %v145 = vpop.f32.mrf.mxu0
    %v146 = vadd.f32 0.0, %v145
    %v147 = vpop.f32.mrf.mxu0
    %v148 = vadd.f32 0.0, %v147
    %149 = vdwg.mxu0
    %v150 = vadd.f32 %v44, %v146
    %v151 = vadd.f32 %v45, %v148
    %152 = vst [vmem:[#allocation2] sm:$0xff] %v150
    %153 = vst [vmem:[#allocation2 + $0x8] sm:$0xff] %v151
    // Predicated region
    $region22: #{tpu_custom_call.1} parent=1 // pred_check
      %p154 = pneg %p38
    $region23: #{tpu_custom_call.1} parent=1 // pred_check_branch
      %156 = sbr.rel (%p154) target = $region25
    $region24: #{tpu_custom_call.1} parent=1 // pred_region
      %v157 = vld [vmem:[#allocation2] sm:$0xff]
      %v158 = vld [vmem:[#allocation2 + $0x8] sm:$0xff]
      %v159 = vmul.f32 %v157, %v158
      %v160 = vsub.f32 1.0, %v159
      %161 = vst [vmem:[#allocation8] sm:$0xff] %v160
    $region25: #{tpu_custom_call.1} parent=1 // pred_fallthru
      _
    // Predicated region
    $region26: #{tpu_custom_call.1} parent=1 // pred_check
      _
    $region27: #{tpu_custom_call.1} parent=1 // pred_check_branch
      %163 = sbr.rel (0) target = $region29
    $region28: #{tpu_custom_call.1} parent=1 // pred_region
      %s165 = ssub.s32 128, 128
      %166 = vsyncadd [#allocation5], %s165
      %s168 = sshll.u32 [#allocation8], 4
      %s169 = int_to_ptr.vmem [resolvable:$true] %s168
      %171 = dma.vmem_to_hbm [thread:$0]  %s169, 128, %s2, [#allocation5]
    $region29: #{tpu_custom_call.1} parent=1 // pred_fallthru
      _
    // Predicated region
    $region30: #{tpu_custom_call.1} parent=1 // pred_check
      _
    $region31: #{tpu_custom_call.1} parent=1 // pred_check_branch
      %173 = sbr.rel (0) target = $region33
    $region32: #{tpu_custom_call.1} parent=1 // pred_region
      %174 = dma.done [#allocation5], 128
    $region33: #{tpu_custom_call.1} parent=1 // pred_fallthru
      _
    %175 = vsyncpa [#allocation4], 1
    %176 = vsyncpa [#allocation7], 1
    %177 = vsyncpa [#allocation5], 1

</llo_original>
